<compile_context>
chip_gen: v5e
topology: v5e:2x2
jax: 0.10.0
libtpu: 0.0.40
codegen_flags: <defaults>
</compile_context>

<pallas_src>
import functools

import jax
import jax.numpy as jnp
from jax.experimental import pallas as pl
from jax.experimental.pallas import tpu as pltpu

EPS = 1e-5


def _round_up(x, m):
    return ((x + m - 1) // m) * m


def _block_kernel_with_ss(x_ref, w_ref, b_ref, gamma_ref, beta_ref,
                          scale_ref, shift_ref, o_ref):
    # x_ref: (TM, dim), w_ref: (dim, dim_out), b_ref/gamma/beta: (1, dim_out)
    # scale/shift: (1, dim_out)  (per-batch row, broadcast over TM), o_ref: (TM, dim_out)
    y = jnp.dot(x_ref[...], w_ref[...], preferred_element_type=jnp.float32)
    y = y + b_ref[...].astype(jnp.float32)

    # LayerNorm over last dim (biased variance), single-pass statistics.
    n = y.shape[-1]
    s1 = jnp.sum(y, axis=-1, keepdims=True)
    s2 = jnp.sum(y * y, axis=-1, keepdims=True)
    mean = s1 * (1.0 / n)
    var = jnp.maximum(s2 * (1.0 / n) - mean * mean, 0.0)
    inv = jax.lax.rsqrt(var + EPS)
    y = (y - mean) * inv * gamma_ref[...].astype(jnp.float32) \
        + beta_ref[...].astype(jnp.float32)

    # scale / shift modulation (per-batch row broadcasts over TM).
    y = y * (scale_ref[...].astype(jnp.float32) + 1.0) \
        + shift_ref[...].astype(jnp.float32)

    # SiLU
    o_ref[...] = (y * jax.nn.sigmoid(y)).astype(o_ref.dtype)


def _block_kernel_no_ss(x_ref, w_ref, b_ref, o_ref):
    y = jnp.dot(x_ref[...], w_ref[...], preferred_element_type=jnp.float32)
    y = y + b_ref[...].astype(jnp.float32)
    o_ref[...] = (y * jax.nn.sigmoid(y)).astype(o_ref.dtype)


def block_forward(x, w, b, gamma, beta, scale_shift=None, *, tm=256):
    """Forward pass of Block.

    x:     (B, S, dim)
    w:     (dim, dim_out)   (already transposed from PyTorch's (dim_out, dim))
    b:     (dim_out,)
    gamma: (dim,)  beta: (dim,)   (LayerNorm params; only used when scale_shift given)
    scale_shift: optional tuple (scale, shift), each broadcastable to (B, 1, dim_out)
    """
    B, S, dim = x.shape
    dim_out = w.shape[1]

    # Row tile: as large as requested, multiple of 8, never larger than needed.
    tm = max(8, min(_round_up(tm, 8), _round_up(S, 8)))
    S_pad = _round_up(S, tm)
    if S_pad != S:
        x = jnp.pad(x, ((0, 0), (0, S_pad - S), (0, 0)))

    b2 = b.reshape(1, dim_out)

    grid = (B, S_pad // tm)
    x_spec = pl.BlockSpec((None, tm, dim), lambda bi, si: (bi, si, 0))
    w_spec = pl.BlockSpec((dim, dim_out), lambda bi, si: (0, 0))
    b_spec = pl.BlockSpec((1, dim_out), lambda bi, si: (0, 0))
    o_spec = pl.BlockSpec((None, tm, dim_out), lambda bi, si: (bi, si, 0))
    out_shape = jax.ShapeDtypeStruct((B, S_pad, dim_out), x.dtype)
    cparams = pltpu.CompilerParams(
        dimension_semantics=("parallel", "parallel"),
        vmem_limit_bytes=64 * 1024 * 1024,
    )
    # TODO(synk): for very large dim/dim_out (weight slab approaching the v7x 64 MiB
    # VMEM budget) add a dim_out grid axis so only a (dim, tn) weight tile is resident.

    if scale_shift is None:
        out = pl.pallas_call(
            _block_kernel_no_ss,
            out_shape=out_shape,
            grid_spec=pltpu.PrefetchScalarGridSpec(
                num_scalar_prefetch=0,
                grid=grid,
                in_specs=[x_spec, w_spec, b_spec],
                out_specs=o_spec,
            ),
            compiler_params=cparams,
        )(x, w, b2)
        return out[:, :S, :]

    # scale_shift path: LayerNorm(dim) is applied to a (.., dim_out) tensor,
    # exactly as in the PyTorch module -> requires dim == dim_out.
    assert dim == dim_out, "LayerNorm(dim) applied after proj requires dim == dim_out"
    scale, shift = scale_shift
    # Keep scale/shift at their natural per-batch size (B, 1, dim_out); the kernel
    # broadcasts them over the row tile, so no (B*S, dim_out) materialization.
    scale3 = jnp.broadcast_to(scale, (B, 1, dim_out))
    shift3 = jnp.broadcast_to(shift, (B, 1, dim_out))
    gamma2 = gamma.reshape(1, dim)
    beta2 = beta.reshape(1, dim)

    ss_spec = pl.BlockSpec((None, 1, dim_out), lambda bi, si: (bi, 0, 0))
    gb_spec = pl.BlockSpec((1, dim), lambda bi, si: (0, 0))

    out = pl.pallas_call(
        _block_kernel_with_ss,
        out_shape=out_shape,
        grid_spec=pltpu.PrefetchScalarGridSpec(
            num_scalar_prefetch=0,
            grid=grid,
            in_specs=[x_spec, w_spec, b_spec, gb_spec, gb_spec, ss_spec, ss_spec],
            out_specs=o_spec,
        ),
        compiler_params=cparams,
    )(x, w, b2, gamma2, beta2, scale3, shift3)
    return out[:, :S, :]


def _reference(x, w, b, gamma, beta, scale_shift=None):
    y = jnp.einsum("bsd,de->bse", x, w) + b
    if scale_shift is not None:
        mean = jnp.mean(y, axis=-1, keepdims=True)
        var = jnp.mean((y - mean) ** 2, axis=-1, keepdims=True)
        y = (y - mean) / jnp.sqrt(var + EPS) * gamma.reshape(1, 1, -1) + beta.reshape(1, 1, -1)
        scale, shift = scale_shift
        y = y * (scale + 1.0) + shift
    return y * jax.nn.sigmoid(y)


if __name__ == "__main__":
    B, S, dim, dim_out = 2, 8, 32, 32

    key = jax.random.PRNGKey(0)
    kx, kw, kb, ks, ksh = jax.random.split(key, 5)

    x = jax.random.normal(kx, (B, S, dim), dtype=jnp.float32)
    # Linear(dim, dim_out): weight is (dim_out, dim) in torch; store transposed (dim, dim_out).
    w = jax.random.normal(kw, (dim, dim_out), dtype=jnp.float32) * 0.1
    b = jax.random.normal(kb, (dim_out,), dtype=jnp.float32) * 0.1
    # LayerNorm params: gamma ones, beta zeros (as in __init__)
    gamma = jnp.ones((dim,), dtype=jnp.float32)
    beta = jnp.zeros((dim,), dtype=jnp.float32)
    # scale/shift as produced by a time-embedding MLP: (B, 1, dim_out)
    scale = jax.random.normal(ks, (B, 1, dim_out), dtype=jnp.float32) * 0.5
    shift = jax.random.normal(ksh, (B, 1, dim_out), dtype=jnp.float32) * 0.5

    # Path 1: with scale_shift (proj -> layernorm -> modulate -> silu)
    out_ss = block_forward(x, w, b, gamma, beta, scale_shift=(scale, shift))
    out_ss = jax.block_until_ready(out_ss)
    ref_ss = _reference(x, w, b, gamma, beta, scale_shift=(scale, shift))

    # Path 2: without scale_shift (proj -> silu)
    out_plain = block_forward(x, w, b, gamma, beta, scale_shift=None)
    out_plain = jax.block_until_ready(out_plain)
    ref_plain = _reference(x, w, b, gamma, beta, scale_shift=None)

    assert out_ss.shape == (B, S, dim_out)
    assert out_plain.shape == (B, S, dim_out)
    assert jnp.allclose(out_ss, ref_ss, atol=1e-4, rtol=1e-4)
    assert jnp.allclose(out_plain, ref_plain, atol=1e-4, rtol=1e-4)

    print("KERNEL_OK")
</pallas_src>

<mosaic_0001>
module attributes {stable_mosaic.version = 11 : i64} {
  func.func @_block_kernel_with_ss(%arg0: i32, %arg1: i32, %arg2: memref<1x8x32xf32, #tpu.memory_space<vmem>>, %arg3: memref<32x32xf32, #tpu.memory_space<vmem>>, %arg4: memref<1x32xf32, #tpu.memory_space<vmem>>, %arg5: memref<1x32xf32, #tpu.memory_space<vmem>>, %arg6: memref<1x32xf32, #tpu.memory_space<vmem>>, %arg7: memref<1x1x32xf32, #tpu.memory_space<vmem>>, %arg8: memref<1x1x32xf32, #tpu.memory_space<vmem>>, %arg9: memref<1x8x32xf32, #tpu.memory_space<vmem>>) attributes {dimension_semantics = [#tpu.dimension_semantics<parallel>, #tpu.dimension_semantics<parallel>], iteration_bounds = array<i64: 2, 1>, scalar_prefetch = 0 : i64, scratch_operands = 0 : i64, tpu.core_type = #tpu.core_type<tc>, window_params = [{transform_indices = @transform_0, window_bounds = array<i64: 1, 8, 32>}, {pipeline_mode = #tpu.pipeline_mode<synchronous>, transform_indices = @transform_1, window_bounds = array<i64: 32, 32>}, {pipeline_mode = #tpu.pipeline_mode<synchronous>, transform_indices = @transform_2, window_bounds = array<i64: 1, 32>}, {pipeline_mode = #tpu.pipeline_mode<synchronous>, transform_indices = @transform_3, window_bounds = array<i64: 1, 32>}, {pipeline_mode = #tpu.pipeline_mode<synchronous>, transform_indices = @transform_4, window_bounds = array<i64: 1, 32>}, {transform_indices = @transform_5, window_bounds = array<i64: 1, 1, 32>}, {transform_indices = @transform_6, window_bounds = array<i64: 1, 1, 32>}, {transform_indices = @transform_7, window_bounds = array<i64: 1, 8, 32>}]} {
    %c0 = arith.constant 0 : index
    %c0_0 = arith.constant 0 : index
    %c0_1 = arith.constant 0 : index
    %0 = vector.load %arg2[%c0, %c0_0, %c0_1] : memref<1x8x32xf32, #tpu.memory_space<vmem>>, vector<1x8x32xf32>
    %1 = vector.shape_cast %0 : vector<1x8x32xf32> to vector<8x32xf32>
    %c0_2 = arith.constant 0 : index
    %c0_3 = arith.constant 0 : index
    %2 = vector.load %arg3[%c0_2, %c0_3] : memref<32x32xf32, #tpu.memory_space<vmem>>, vector<32x32xf32>
    %cst = arith.constant dense<0.000000e+00> : vector<8x32xf32>
    %3 = tpu.matmul %1, %2, %cst {dimension_numbers = #tpu.dot_dimension_numbers<[1], [0], [0], [1], [0, 0, 1, 1], [], []>} : vector<8x32xf32>, vector<32x32xf32>, vector<8x32xf32> -> vector<8x32xf32>
    %c0_4 = arith.constant 0 : index
    %c0_5 = arith.constant 0 : index
    %4 = vector.load %arg4[%c0_4, %c0_5] : memref<1x32xf32, #tpu.memory_space<vmem>>, vector<1x32xf32>
    %5 = vector.broadcast %4 : vector<1x32xf32> to vector<8x32xf32>
    %6 = arith.addf %3, %5 : vector<8x32xf32>
    %cst_6 = arith.constant dense<0.000000e+00> : vector<8xf32>
    %7 = vector.multi_reduction <add>, %6, %cst_6 [1] : vector<8x32xf32> to vector<8xf32>
    %8 = vector.shape_cast %7 : vector<8xf32> to vector<8x1xf32>
    %9 = arith.mulf %6, %6 : vector<8x32xf32>
    %cst_7 = arith.constant dense<0.000000e+00> : vector<8xf32>
    %10 = vector.multi_reduction <add>, %9, %cst_7 [1] : vector<8x32xf32> to vector<8xf32>
    %11 = vector.shape_cast %10 : vector<8xf32> to vector<8x1xf32>
    %cst_8 = arith.constant 3.125000e-02 : f32
    %12 = vector.broadcast %cst_8 : f32 to vector<8x1xf32>
    %13 = arith.mulf %8, %12 : vector<8x1xf32>
    %cst_9 = arith.constant 3.125000e-02 : f32
    %14 = vector.broadcast %cst_9 : f32 to vector<8x1xf32>
    %15 = arith.mulf %11, %14 : vector<8x1xf32>
    %16 = arith.mulf %13, %13 : vector<8x1xf32>
    %17 = arith.subf %15, %16 : vector<8x1xf32>
    %cst_10 = arith.constant 0.000000e+00 : f32
    %18 = vector.broadcast %cst_10 : f32 to vector<8x1xf32>
    %19 = arith.maximumf %17, %18 : vector<8x1xf32>
    %cst_11 = arith.constant 9.99999974E-6 : f32
    %20 = vector.broadcast %cst_11 : f32 to vector<8x1xf32>
    %21 = arith.addf %19, %20 : vector<8x1xf32>
    %22 = math.rsqrt %21 : vector<8x1xf32>
    %23 = vector.broadcast %13 : vector<8x1xf32> to vector<8x32xf32>
    %24 = arith.subf %6, %23 : vector<8x32xf32>
    %25 = vector.broadcast %22 : vector<8x1xf32> to vector<8x32xf32>
    %26 = arith.mulf %24, %25 : vector<8x32xf32>
    %c0_12 = arith.constant 0 : index
    %c0_13 = arith.constant 0 : index
    %27 = vector.load %arg5[%c0_12, %c0_13] : memref<1x32xf32, #tpu.memory_space<vmem>>, vector<1x32xf32>
    %28 = vector.broadcast %27 : vector<1x32xf32> to vector<8x32xf32>
    %29 = arith.mulf %26, %28 : vector<8x32xf32>
    %c0_14 = arith.constant 0 : index
    %c0_15 = arith.constant 0 : index
    %30 = vector.load %arg6[%c0_14, %c0_15] : memref<1x32xf32, #tpu.memory_space<vmem>>, vector<1x32xf32>
    %31 = vector.broadcast %30 : vector<1x32xf32> to vector<8x32xf32>
    %32 = arith.addf %29, %31 : vector<8x32xf32>
    %c0_16 = arith.constant 0 : index
    %c0_17 = arith.constant 0 : index
    %c0_18 = arith.constant 0 : index
    %33 = vector.load %arg7[%c0_16, %c0_17, %c0_18] : memref<1x1x32xf32, #tpu.memory_space<vmem>>, vector<1x1x32xf32>
    %34 = vector.shape_cast %33 : vector<1x1x32xf32> to vector<1x32xf32>
    %cst_19 = arith.constant 1.000000e+00 : f32
    %35 = vector.broadcast %cst_19 : f32 to vector<1x32xf32>
    %36 = arith.addf %34, %35 : vector<1x32xf32>
    %37 = vector.broadcast %36 : vector<1x32xf32> to vector<8x32xf32>
    %38 = arith.mulf %32, %37 : vector<8x32xf32>
    %c0_20 = arith.constant 0 : index
    %c0_21 = arith.constant 0 : index
    %c0_22 = arith.constant 0 : index
    %39 = vector.load %arg8[%c0_20, %c0_21, %c0_22] : memref<1x1x32xf32, #tpu.memory_space<vmem>>, vector<1x1x32xf32>
    %40 = vector.shape_cast %39 : vector<1x1x32xf32> to vector<1x32xf32>
    %41 = vector.broadcast %40 : vector<1x32xf32> to vector<8x32xf32>
    %42 = arith.addf %38, %41 : vector<8x32xf32>
    %43 = arith.negf %42 : vector<8x32xf32>
    %44 = math.exp %43 : vector<8x32xf32>
    %cst_23 = arith.constant 1.000000e+00 : f32
    %45 = vector.broadcast %cst_23 : f32 to vector<8x32xf32>
    %46 = arith.addf %45, %44 : vector<8x32xf32>
    %47 = arith.divf %45, %46 : vector<8x32xf32>
    %48 = arith.mulf %42, %47 : vector<8x32xf32>
    %c0_24 = arith.constant 0 : index
    %c0_25 = arith.constant 0 : index
    %c0_26 = arith.constant 0 : index
    %49 = vector.load %arg9[%c0_24, %c0_25, %c0_26] : memref<1x8x32xf32, #tpu.memory_space<vmem>>, vector<1x8x32xf32>
    %50 = vector.shape_cast %49 : vector<1x8x32xf32> to vector<8x32xf32>
    %51 = vector.shape_cast %48 : vector<8x32xf32> to vector<1x8x32xf32>
    tpu.vector_store %arg9[%c0_24, %c0_25, %c0_26], %51 {strides = array<i32>} : memref<1x8x32xf32, #tpu.memory_space<vmem>>, vector<1x8x32xf32>,
    return
  }
  func.func @transform_0(%arg0: i32, %arg1: i32) -> (i32, i32, i32) {
    %c0_i32 = arith.constant 0 : i32
    %c0_i32_0 = arith.constant 0 : i32
    return %arg0, %arg1, %c0_i32 : i32, i32, i32
  }
  func.func @transform_1(%arg0: i32, %arg1: i32) -> (i32, i32) {
    %c0_i32 = arith.constant 0 : i32
    %c0_i32_0 = arith.constant 0 : i32
    %c0_i32_1 = arith.constant 0 : i32
    return %c0_i32, %c0_i32_0 : i32, i32
  }
  func.func @transform_2(%arg0: i32, %arg1: i32) -> (i32, i32) {
    %c0_i32 = arith.constant 0 : i32
    %c0_i32_0 = arith.constant 0 : i32
    %c0_i32_1 = arith.constant 0 : i32
    return %c0_i32, %c0_i32_0 : i32, i32
  }
  func.func @transform_3(%arg0: i32, %arg1: i32) -> (i32, i32) {
    %c0_i32 = arith.constant 0 : i32
    %c0_i32_0 = arith.constant 0 : i32
    %c0_i32_1 = arith.constant 0 : i32
    return %c0_i32, %c0_i32_0 : i32, i32
  }
  func.func @transform_4(%arg0: i32, %arg1: i32) -> (i32, i32) {
    %c0_i32 = arith.constant 0 : i32
    %c0_i32_0 = arith.constant 0 : i32
    %c0_i32_1 = arith.constant 0 : i32
    return %c0_i32, %c0_i32_0 : i32, i32
  }
  func.func @transform_5(%arg0: i32, %arg1: i32) -> (i32, i32, i32) {
    %c0_i32 = arith.constant 0 : i32
    %c0_i32_0 = arith.constant 0 : i32
    %c0_i32_1 = arith.constant 0 : i32
    return %arg0, %c0_i32, %c0_i32_0 : i32, i32, i32
  }
  func.func @transform_6(%arg0: i32, %arg1: i32) -> (i32, i32, i32) {
    %c0_i32 = arith.constant 0 : i32
    %c0_i32_0 = arith.constant 0 : i32
    %c0_i32_1 = arith.constant 0 : i32
    return %arg0, %c0_i32, %c0_i32_0 : i32, i32, i32
  }
  func.func @transform_7(%arg0: i32, %arg1: i32) -> (i32, i32, i32) {
    %c0_i32 = arith.constant 0 : i32
    %c0_i32_0 = arith.constant 0 : i32
    return %arg0, %arg1, %c0_i32 : i32, i32, i32
  }
}

</mosaic_0001>

<llo_original>
// kernel: tpu_custom_call.1
$region0: #{tpu_custom_call.1}
  #allocation0 [shape = 'u32[]', space=smem, size = 0x4, offset = 0x4, fixed_abs, tag = 'smem constant byte address 0x4 - core index']
  #allocation1 [shape = 'u32[72,128]{1,0:T(1,128)}', space=vmem, size = 0x9000, scoped, tag = 'internal scratch']
  %s0 = inlined_call_operand.hbm [shape: f32[2,8,32], index: 0, kind: input, shape index: {}]
  %s1 = inlined_call_operand.hbm [shape: f32[32,32], index: 1, kind: input, shape index: {}]
  %s2 = inlined_call_operand.hbm [shape: f32[1,32], index: 2, kind: input, shape index: {}]
  %s3 = inlined_call_operand.hbm [shape: f32[1,32], index: 3, kind: input, shape index: {}]
  %s4 = inlined_call_operand.hbm [shape: f32[1,32], index: 4, kind: input, shape index: {}]
  %s5 = inlined_call_operand.vmem [shape: f32[2,1,32], index: 5, kind: input, shape index: {}]
  %s6 = inlined_call_operand.vmem [shape: f32[2,1,32], index: 6, kind: input, shape index: {}]
  %s7 = inlined_call_operand.hbm [shape: f32[2,8,32], index: 7, kind: output, shape index: {}]
  %s8 = sld [smem:[#allocation0]]
  $region81: #{tpu_custom_call.1} parent=0
    _
  %s10 = ssub.s32 1, %s8
  %s11 = scalar_select 0, %s10, %s8
  $region1: #{tpu_custom_call.1} parent=0
    #allocation2 [shape = 'u8[8192]{0}', space=vmem, size = 0x2000, scoped, tag = 'input window, operand 0']
    #allocation3 [shape = 's32[2]{0}', space=sflag, size = 0x8, scoped, tag = 'scoped memory for tpu_custom_call.1']
    #allocation4 [shape = 's32[2]{0}', space=sflag, size = 0x8, scoped, tag = 'scoped memory for tpu_custom_call.1']
    #allocation5 [shape = 'u8[16384]{0}', space=vmem, size = 0x4000, scoped, tag = 'input window, operand 1, single buffered']
    #allocation6 [shape = 's32[1]{0}', space=sflag, size = 0x4, scoped, tag = 'scoped memory for tpu_custom_call.1']
    #allocation7 [shape = 'u8[512]{0}', space=vmem, size = 0x400, scoped, tag = 'input window, operand 2, single buffered']
    #allocation8 [shape = 'u8[512]{0}', space=vmem, size = 0x400, scoped, tag = 'input window, operand 3, single buffered']
    #allocation9 [shape = 's32[1]{0}', space=sflag, size = 0x4, scoped, tag = 'scoped memory for tpu_custom_call.1']
    #allocation10 [shape = 'u8[512]{0}', space=vmem, size = 0x400, scoped, tag = 'input window, operand 4, single buffered']
    #allocation11 [shape = 'u8[8192]{0}', space=vmem, size = 0x2000, scoped, tag = 'output window, operand 0']
    %12 = vsyncpa [#allocation3], 0
    %s13 = scalar_lea.sflag [#allocation3], 1
    %14 = vsyncpa %s13, 0
    %15 = vsyncpa [#allocation6], 0
    %16 = vsyncpa [#allocation9], 0
    %17 = vsyncpa [#allocation4], 0
    %s18 = scalar_lea.sflag [#allocation4], 1
    %19 = vsyncpa %s18, 0
    loop: start=0, step=1, limit=4
    $region2: #{tpu_custom_call.1} parent=1 // loop_pre_header
      _
    $region3: #{tpu_custom_call.1} parent=1 // loop_header
      %s21 = sphi 0, %s25
      %p22 = scmp.ge.s32.totalorder %s21, 4
      %s28 = sphi 0, %s40
      %s29 = sphi 0, %s36
      %s30 = sphi 0, %s28
      %s31 = sphi 0, %s29
      %s32 = sphi 0, %s30
      %s33 = sphi 0, %s31
      %s45 = sphi 0, %s47
      %s48 = sphi 0, %s45
      %s49 = sphi 0, %s48
      %s65 = sphi 0, %s49
      %s69 = sphi 0, %s69
      %s71 = sphi 0, %s69
      %s72 = sphi 0, %s71
      %s86 = sphi 0, %s72
      %s90 = sphi 0, %s90
      %s92 = sphi 0, %s90
      %s93 = sphi 0, %s92
      %s107 = sphi 0, %s93
      %s111 = sphi 0, %s111
      %s113 = sphi 0, %s111
      %s114 = sphi 0, %s113
      %s128 = sphi 0, %s114
      %s132 = sphi 0, %s132
      %s134 = sphi 0, %s132
      %s135 = sphi 0, %s134
      %s149 = sphi 0, %s135
      %s155 = sphi 0, %s157
      %s158 = sphi 0, %s155
      %s159 = sphi 0, %s158
      %s175 = sphi 0, %s159
      %s181 = sphi 0, %s183
      %s184 = sphi 0, %s181
      %s185 = sphi 0, %s184
      %s201 = sphi 0, %s185
      %s209 = sphi 0, %s211
      %s212 = sphi 0, %s209
      %s213 = sphi 0, %s212
      %s229 = sphi 0, %s213
    $region4: #{tpu_custom_call.1} parent=1 // loop_header_branch
      %24 = sbr.rel (%p22) target = $region8
    $region5: #{tpu_custom_call.1} parent=1 // loop_body
      %s26 = ssub.s32 %s21, 1
      %s27 = ssub.s32 %s21, 2
      %s34 = sadd.s32 1, %s29
      %p35 = scmp.ge.s32.totalorder %s34, 1
      %s36 = scalar_select %p35, 0, %s34
      %s37 = sadd.s32 1, %s28
      %s38 = scalar_select %p35, %s37, %s28
      %p39 = scmp.ge.s32.totalorder %s38, 2
      %s40 = scalar_select %p39, 0, %s38
      %s41 = ssub.s32 %s28, %s40
      %s42 = ssub.s32 %s29, %s36
      %s43 = sor.u32 %s41, %s42
      %p44 = scmp.eq.s32.totalorder %s43, 0
      %s46 = sadd.s32 %s45, 1
      %s47 = scalar_select %p44, %s45, %s46
      %p50 = pneg %p44
      %p51 = scmp.eq.s32.totalorder %s21, 1
      %p52 = por %p50, %p51
      %p53 = scmp.ne.s32.totalorder %s45, %s48
      %p54 = scmp.eq.s32.totalorder %s21, 0
      %p55 = por %p53, %p54
      %p56 = scmp.ne.s32.totalorder %s45, %s48
      %p57 = scmp.eq.s32.totalorder %s26, 1
      %p58 = por %p56, %p57
      %p59 = scmp.ne.s32.totalorder %s48, %s49
      %p60 = scmp.eq.s32.totalorder %s26, 0
      %p61 = por %p59, %p60
      %p62 = scmp.ne.s32.totalorder %s48, %s49
      %p63 = scmp.eq.s32.totalorder %s27, 1
      %p64 = por %p62, %p63
      %p66 = scmp.ne.s32.totalorder %s49, %s65
      %p67 = scmp.eq.s32.totalorder %s27, 0
      %p68 = por %p66, %p67
      %s70 = sadd.s32 %s69, 1
      %p73 = scmp.eq.s32.totalorder %s21, 1
      %p74 = scmp.ne.s32.totalorder %s69, %s71
      %p75 = scmp.eq.s32.totalorder %s21, 0
      %p76 = por %p74, %p75
      %p77 = scmp.ne.s32.totalorder %s69, %s71
      %p78 = scmp.eq.s32.totalorder %s26, 1
      %p79 = por %p77, %p78
      %p80 = scmp.ne.s32.totalorder %s71, %s72
      %p81 = scmp.eq.s32.totalorder %s26, 0
      %p82 = por %p80, %p81
      %p83 = scmp.ne.s32.totalorder %s71, %s72
      %p84 = scmp.eq.s32.totalorder %s27, 1
      %p85 = por %p83, %p84
      %p87 = scmp.ne.s32.totalorder %s72, %s86
      %p88 = scmp.eq.s32.totalorder %s27, 0
      %p89 = por %p87, %p88
      %s91 = sadd.s32 %s90, 1
      %p94 = scmp.eq.s32.totalorder %s21, 1
      %p95 = scmp.ne.s32.totalorder %s90, %s92
      %p96 = scmp.eq.s32.totalorder %s21, 0
      %p97 = por %p95, %p96
      %p98 = scmp.ne.s32.totalorder %s90, %s92
      %p99 = scmp.eq.s32.totalorder %s26, 1
      %p100 = por %p98, %p99
      %p101 = scmp.ne.s32.totalorder %s92, %s93
      %p102 = scmp.eq.s32.totalorder %s26, 0
      %p103 = por %p101, %p102
      %p104 = scmp.ne.s32.totalorder %s92, %s93
      %p105 = scmp.eq.s32.totalorder %s27, 1
      %p106 = por %p104, %p105
      %p108 = scmp.ne.s32.totalorder %s93, %s107
      %p109 = scmp.eq.s32.totalorder %s27, 0
      %p110 = por %p108, %p109
      %s112 = sadd.s32 %s111, 1
      %p115 = scmp.eq.s32.totalorder %s21, 1
      %p116 = scmp.ne.s32.totalorder %s111, %s113
      %p117 = scmp.eq.s32.totalorder %s21, 0
      %p118 = por %p116, %p117
      %p119 = scmp.ne.s32.totalorder %s111, %s113
      %p120 = scmp.eq.s32.totalorder %s26, 1
      %p121 = por %p119, %p120
      %p122 = scmp.ne.s32.totalorder %s113, %s114
      %p123 = scmp.eq.s32.totalorder %s26, 0
      %p124 = por %p122, %p123
      %p125 = scmp.ne.s32.totalorder %s113, %s114
      %p126 = scmp.eq.s32.totalorder %s27, 1
      %p127 = por %p125, %p126
      %p129 = scmp.ne.s32.totalorder %s114, %s128
      %p130 = scmp.eq.s32.totalorder %s27, 0
      %p131 = por %p129, %p130
      %s133 = sadd.s32 %s132, 1
      %p136 = scmp.eq.s32.totalorder %s21, 1
      %p137 = scmp.ne.s32.totalorder %s132, %s134
      %p138 = scmp.eq.s32.totalorder %s21, 0
      %p139 = por %p137, %p138
      %p140 = scmp.ne.s32.totalorder %s132, %s134
      %p141 = scmp.eq.s32.totalorder %s26, 1
      %p142 = por %p140, %p141
      %p143 = scmp.ne.s32.totalorder %s134, %s135
      %p144 = scmp.eq.s32.totalorder %s26, 0
      %p145 = por %p143, %p144
      %p146 = scmp.ne.s32.totalorder %s134, %s135
      %p147 = scmp.eq.s32.totalorder %s27, 1
      %p148 = por %p146, %p147
      %p150 = scmp.ne.s32.totalorder %s135, %s149
      %p151 = scmp.eq.s32.totalorder %s27, 0
      %p152 = por %p150, %p151
      %s153 = ssub.s32 %s28, %s40
      %p154 = scmp.eq.s32.totalorder %s153, 0
      %s156 = sadd.s32 %s155, 1
      %s157 = scalar_select %p154, %s155, %s156
      %p160 = pneg %p154
      %p161 = scmp.eq.s32.totalorder %s21, 1
      %p162 = por %p160, %p161
      %p163 = scmp.ne.s32.totalorder %s155, %s158
      %p164 = scmp.eq.s32.totalorder %s21, 0
      %p165 = por %p163, %p164
      %p166 = scmp.ne.s32.totalorder %s155, %s158
      %p167 = scmp.eq.s32.totalorder %s26, 1
      %p168 = por %p166, %p167
      %p169 = scmp.ne.s32.totalorder %s158, %s159
      %p170 = scmp.eq.s32.totalorder %s26, 0
      %p171 = por %p169, %p170
      %p172 = scmp.ne.s32.totalorder %s158, %s159
      %p173 = scmp.eq.s32.totalorder %s27, 1
      %p174 = por %p172, %p173
      %p176 = scmp.ne.s32.totalorder %s159, %s175
      %p177 = scmp.eq.s32.totalorder %s27, 0
      %p178 = por %p176, %p177
      %s179 = ssub.s32 %s28, %s40
      %p180 = scmp.eq.s32.totalorder %s179, 0
      %s182 = sadd.s32 %s181, 1
      %s183 = scalar_select %p180, %s181, %s182
      %p186 = pneg %p180
      %p187 = scmp.eq.s32.totalorder %s21, 1
      %p188 = por %p186, %p187
      %p189 = scmp.ne.s32.totalorder %s181, %s184
      %p190 = scmp.eq.s32.totalorder %s21, 0
      %p191 = por %p189, %p190
      %p192 = scmp.ne.s32.totalorder %s181, %s184
      %p193 = scmp.eq.s32.totalorder %s26, 1
      %p194 = por %p192, %p193
      %p195 = scmp.ne.s32.totalorder %s184, %s185
      %p196 = scmp.eq.s32.totalorder %s26, 0
      %p197 = por %p195, %p196
      %p198 = scmp.ne.s32.totalorder %s184, %s185
      %p199 = scmp.eq.s32.totalorder %s27, 1
      %p200 = por %p198, %p199
      %p202 = scmp.ne.s32.totalorder %s185, %s201
      %p203 = scmp.eq.s32.totalorder %s27, 0
      %p204 = por %p202, %p203
      %s205 = ssub.s32 %s28, %s40
      %s206 = ssub.s32 %s29, %s36
      %s207 = sor.u32 %s205, %s206
      %p208 = scmp.eq.s32.totalorder %s207, 0
      %s210 = sadd.s32 %s209, 1
      %s211 = scalar_select %p208, %s209, %s210
      %p214 = pneg %p208
      %p215 = scmp.eq.s32.totalorder %s21, 1
      %p216 = por %p214, %p215
      %p217 = scmp.ne.s32.totalorder %s209, %s212
      %p218 = scmp.eq.s32.totalorder %s21, 0
      %p219 = por %p217, %p218
      %p220 = scmp.ne.s32.totalorder %s209, %s212
      %p221 = scmp.eq.s32.totalorder %s26, 1
      %p222 = por %p220, %p221
      %p223 = scmp.ne.s32.totalorder %s212, %s213
      %p224 = scmp.eq.s32.totalorder %s26, 0
      %p225 = por %p223, %p224
      %p226 = scmp.ne.s32.totalorder %s212, %s213
      %p227 = scmp.eq.s32.totalorder %s27, 1
      %p228 = por %p226, %p227
      %p230 = scmp.ne.s32.totalorder %s213, %s229
      %p231 = scmp.eq.s32.totalorder %s27, 0
      %p232 = por %p230, %p231
      %p233 = scmp.le.s32.totalorder 1, %s21
      %p234 = scmp.lt.s32.totalorder %s21, 3
      %p235 = pnand %p233, %p234
      %p236 = pneg %p235
      // Predicated region
      $region9: #{tpu_custom_call.1} parent=5 // pred_check
        _
      $region10: #{tpu_custom_call.1} parent=5 // pred_check_branch
        %238 = sbr.rel (%p235) target = $region12
      $region11: #{tpu_custom_call.1} parent=5 // pred_region
        %s239 = ssub.s32 %s21, 1
        // Predicated region
        $region13: #{tpu_custom_call.1} parent=11 // pred_check
          %p240 = pneg %p82
        $region14: #{tpu_custom_call.1} parent=11 // pred_check_branch
          %242 = sbr.rel (%p240) target = $region16
        $region15: #{tpu_custom_call.1} parent=11 // pred_region
          %244 = vsyncadd [#allocation6], 0
          %s245 = sshll.u32 %s1, 4
          %s246 = int_to_ptr.hbm [resolvable:$true] %s245
          %s247 = sshll.u32 [#allocation5], 4
          %s248 = int_to_ptr.vmem [resolvable:$true] %s247
          %253 = dma.hbm_to_vmem [thread:$0]  %s246, 512, %s248, [#allocation6], 128, 128, 8
        $region16: #{tpu_custom_call.1} parent=11 // pred_fallthru
          _
        // Predicated region
        $region17: #{tpu_custom_call.1} parent=11 // pred_check
          %p254 = pneg %p103
        $region18: #{tpu_custom_call.1} parent=11 // pred_check_branch
          %256 = sbr.rel (%p254) target = $region20
        $region19: #{tpu_custom_call.1} parent=11 // pred_region
          %258 = vsyncadd [#allocation6], 0
          %s260 = sshll.u32 %s2, 4
          %s261 = int_to_ptr.hbm [resolvable:$true] %s260
          %s262 = sshll.u32 [#allocation7], 4
          %s263 = int_to_ptr.vmem [resolvable:$true] %s262
          %265 = dma.hbm_to_vmem [thread:$0]  %s261, 16, %s263, [#allocation6]
        $region20: #{tpu_custom_call.1} parent=11 // pred_fallthru
          _
        // Predicated region
        $region21: #{tpu_custom_call.1} parent=11 // pred_check
          %p266 = pneg %p124
        $region22: #{tpu_custom_call.1} parent=11 // pred_check_branch
          %268 = sbr.rel (%p266) target = $region24
        $region23: #{tpu_custom_call.1} parent=11 // pred_region
          %270 = vsyncadd [#allocation9], 0
          %s272 = sshll.u32 %s3, 4
          %s273 = int_to_ptr.hbm [resolvable:$true] %s272
          %s274 = sshll.u32 [#allocation8], 4
          %s275 = int_to_ptr.vmem [resolvable:$true] %s274
          %277 = dma.hbm_to_vmem [thread:$0]  %s273, 16, %s275, [#allocation9]
        $region24: #{tpu_custom_call.1} parent=11 // pred_fallthru
          _
        // Predicated region
        $region25: #{tpu_custom_call.1} parent=11 // pred_check
          %p278 = pneg %p145
        $region26: #{tpu_custom_call.1} parent=11 // pred_check_branch
          %280 = sbr.rel (%p278) target = $region28
        $region27: #{tpu_custom_call.1} parent=11 // pred_region
          %282 = vsyncadd [#allocation9], 0
          %s284 = sshll.u32 %s4, 4
          %s285 = int_to_ptr.hbm [resolvable:$true] %s284
          %s286 = sshll.u32 [#allocation10], 4
          %s287 = int_to_ptr.vmem [resolvable:$true] %s286
          %289 = dma.hbm_to_vmem [thread:$0]  %s285, 16, %s287, [#allocation9]
        $region28: #{tpu_custom_call.1} parent=11 // pred_fallthru
          _
      $region12: #{tpu_custom_call.1} parent=5 // pred_fallthru
        _
      %p290 = scmp.lt.s32.totalorder %s21, 2
      // Predicated region
      $region29: #{tpu_custom_call.1} parent=5 // pred_check
        %p291 = pneg %p290
      $region30: #{tpu_custom_call.1} parent=5 // pred_check_branch
        %293 = sbr.rel (%p291) target = $region32
      $region31: #{tpu_custom_call.1} parent=5 // pred_region
        // Predicated region
        $region33: #{tpu_custom_call.1} parent=31 // pred_check
          %p294 = pneg %p55
        $region34: #{tpu_custom_call.1} parent=31 // pred_check_branch
          %296 = sbr.rel (%p294) target = $region36
        $region35: #{tpu_custom_call.1} parent=31 // pred_region
          %s297 = sand.u32 %s45, 1
          %s298 = scalar_lea.sflag [#allocation3], %s297
          %s299 = sand.u32 %s45, 1
          %s300 = smul.addr %s299, 8
          %s301 = scalar_lea.vmem [#allocation2], %s300
          %303 = vsyncadd %s298, 0
          %s304 = sadd.s32 %s29, %s28
          %s305 = smul.addr %s304, 8
          %s306 = scalar_lea.hbm %s0, %s305
          %s308 = sshll.u32 %s306, 4
          %s309 = int_to_ptr.hbm [resolvable:$true] %s308
          %s310 = sshll.u32 %s301, 4
          %s311 = int_to_ptr.vmem [resolvable:$true] %s310
          %313 = dma.hbm_to_vmem [thread:$0]  %s309, 128, %s311, %s298
        $region36: #{tpu_custom_call.1} parent=31 // pred_fallthru
          _
        // Predicated region
        $region37: #{tpu_custom_call.1} parent=31 // pred_check
          %p314 = pneg %p165
        $region38: #{tpu_custom_call.1} parent=31 // pred_check_branch
          %316 = sbr.rel (%p314) target = $region40
        $region39: #{tpu_custom_call.1} parent=31 // pred_region
          %p317 = scmp.lt.s32.totalorder %s28, 1
          %s318 = scalar_select %p317, %s28, 1
          %s319 = scalar_lea.vmem %s5, %s318
        $region40: #{tpu_custom_call.1} parent=31 // pred_fallthru
          _
        // Predicated region
        $region41: #{tpu_custom_call.1} parent=31 // pred_check
          %p320 = pneg %p191
        $region42: #{tpu_custom_call.1} parent=31 // pred_check_branch
          %322 = sbr.rel (%p320) target = $region44
        $region43: #{tpu_custom_call.1} parent=31 // pred_region
          %p323 = scmp.lt.s32.totalorder %s28, 1
          %s324 = scalar_select %p323, %s28, 1
          %s325 = scalar_lea.vmem %s6, %s324
        $region44: #{tpu_custom_call.1} parent=31 // pred_fallthru
          _
      $region32: #{tpu_custom_call.1} parent=5 // pred_fallthru
        _
      %p326 = scmp.le.s32.totalorder 1, %s21
      %p327 = scmp.lt.s32.totalorder %s21, 3
      %p328 = pnand %p326, %p327
      %p329 = pneg %p328
      // Predicated region
      $region45: #{tpu_custom_call.1} parent=5 // pred_check
        _
      $region46: #{tpu_custom_call.1} parent=5 // pred_check_branch
        %331 = sbr.rel (%p328) target = $region48
      $region47: #{tpu_custom_call.1} parent=5 // pred_region
        %s332 = ssub.s32 %s21, 1
        %s333 = sand.u32 %s48, 1
        %s334 = scalar_lea.sflag [#allocation3], %s333
        %s335 = sand.u32 %s48, 1
        %s336 = smul.addr %s335, 8
        %s337 = scalar_lea.vmem [#allocation2], %s336
        // Predicated region
        $region49: #{tpu_custom_call.1} parent=47 // pred_check
          %p338 = pneg %p61
        $region50: #{tpu_custom_call.1} parent=47 // pred_check_branch
          %340 = sbr.rel (%p338) target = $region52
        $region51: #{tpu_custom_call.1} parent=47 // pred_region
          %342 = dma.done %s334, 128
        $region52: #{tpu_custom_call.1} parent=47 // pred_fallthru
          _
        // Predicated region
        $region53: #{tpu_custom_call.1} parent=47 // pred_check
          %p343 = pneg %p82
        $region54: #{tpu_custom_call.1} parent=47 // pred_check_branch
          %345 = sbr.rel (%p343) target = $region56
        $region55: #{tpu_custom_call.1} parent=47 // pred_region
          %347 = dma.done [#allocation6], 512
        $region56: #{tpu_custom_call.1} parent=47 // pred_fallthru
          _
        // Predicated region
        $region57: #{tpu_custom_call.1} parent=47 // pred_check
          %p348 = pneg %p103
        $region58: #{tpu_custom_call.1} parent=47 // pred_check_branch
          %350 = sbr.rel (%p348) target = $region60
        $region59: #{tpu_custom_call.1} parent=47 // pred_region
          %352 = dma.done [#allocation6], 16
        $region60: #{tpu_custom_call.1} parent=47 // pred_fallthru
          _
        // Predicated region
        $region61: #{tpu_custom_call.1} parent=47 // pred_check
          %p353 = pneg %p124
        $region62: #{tpu_custom_call.1} parent=47 // pred_check_branch
          %355 = sbr.rel (%p353) target = $region64
        $region63: #{tpu_custom_call.1} parent=47 // pred_region
          %357 = dma.done [#allocation9], 16
        $region64: #{tpu_custom_call.1} parent=47 // pred_fallthru
          _
        // Predicated region
        $region65: #{tpu_custom_call.1} parent=47 // pred_check
          %p358 = pneg %p145
        $region66: #{tpu_custom_call.1} parent=47 // pred_check_branch
          %360 = sbr.rel (%p358) target = $region68
        $region67: #{tpu_custom_call.1} parent=47 // pred_region
          %362 = dma.done [#allocation9], 16
        $region68: #{tpu_custom_call.1} parent=47 // pred_fallthru
          _
        %s363 = sand.u32 %s48, 1
        %s364 = scalar_lea.sflag [#allocation3], %s363
        %s365 = sand.u32 %s48, 1
        %s366 = smul.addr %s365, 8
        %s367 = scalar_lea.vmem [#allocation2], %s366
        %p368 = pneg %p61
        %p369 = pneg %p58
        %p370 = pneg %p82
        %p371 = pneg %p79
        %p372 = pneg %p103
        %p373 = pneg %p100
        %p374 = pneg %p124
        %p375 = pneg %p121
        %p376 = pneg %p145
        %p377 = pneg %p142
        %p378 = scmp.lt.s32.totalorder %s30, 1
        %s379 = scalar_select %p378, %s30, 1
        %s380 = scalar_lea.vmem %s5, %s379
        %p381 = pneg %p171
        %p382 = pneg %p168
        %p383 = scmp.lt.s32.totalorder %s30, 1
        %s384 = scalar_select %p383, %s30, 1
        %s385 = scalar_lea.vmem %s6, %s384
        %p386 = pneg %p197
        %p387 = pneg %p194
        %p388 = pneg %p225
        %p389 = pneg %p222
        %s390 = sand.u32 %s212, 1
        %s391 = scalar_lea.sflag [#allocation4], %s390
        %s392 = sand.u32 %s212, 1
        %s393 = smul.addr %s392, 8
        %s394 = scalar_lea.vmem [#allocation11], %s393
        %p395 = scmp.lt.s32.totalorder %s30, 1
        %s396 = scalar_select %p395, %s30, 1
        %s397 = scalar_lea.vmem %s5, %s396
        %p398 = scmp.lt.s32.totalorder %s30, 1
        %s399 = scalar_select %p398, %s30, 1
        %s400 = scalar_lea.vmem %s6, %s399
        %v401 = vld [vmem:[%s337] sm:$0xff]
        %v402 = vld [vmem:[#allocation5] sm:$0xff]
        %v403 = vld [vmem:[#allocation5 + $0x8] sm:$0xff]
        %v404 = vld [vmem:[#allocation5 + $0x10] sm:$0xff]
        %v405 = vld [vmem:[#allocation5 + $0x18] sm:$0xff]
        %v406 = vld [vmem:[#allocation7] sm:$0x1]
        %v408 = vperm.slane %v406, 0
        %vm410 = vcmask 261120
        %v412 = vsel %vm410, %v401, 0
        %414 = vmatpush.msra.mxu0 0.0
        %415 = vmatpush.msra.mxu0 0.0
        %416 = vmatpush.msra.mxu0 0.0
        %417 = vmatpush.msra.mxu0 0.0
        %418 = vmatpush.msra.mxu0 0.0
        %419 = vmatpush.msra.mxu0 0.0
        %420 = vmatpush.msra.mxu0 0.0
        %421 = vmatpush.msra.mxu0 0.0
        %422 = vmatpush.msra.mxu0 0.0
        %423 = vmatpush.msra.mxu0 0.0
        %424 = vmatpush.msra.mxu0 0.0
        %425 = vmatpush.msra.mxu0 0.0
        %426 = vmatpush.msra.mxu0 %v405
        %427 = vmatpush.msra.mxu0 %v404
        %428 = vmatpush.msra.mxu0 %v403
        %429 = vmatpush.msra.mxu0 %v402
        %430 = vmatmul.f32.gmra.mxu0 %v412
        %v431 = vpop.f32.mrf.mxu0
        %v432 = vadd.f32 %v408, %v431
        %433 = vdwg.mxu0
        %v434 = vsel %vm410, %v432, 0.0
        %435 = vadd.xlane.f32.xlu0 %v434
        %v436 = vpop.xlane.xlu0 %435
        %v437 = vmul.f32 %v432, %v432
        %v438 = vsel %vm410, %v437, 0.0
        %439 = vadd.xlane.f32.xlu0 %v438
        %v440 = vpop.xlane.xlu0 %439
        %v441 = vmul.f32 %v436, 0.03125
        %v442 = vmul.f32 %v440, 0.03125
        %v443 = vmul.f32 %v441, %v441
        %v444 = vsub.f32 %v442, %v443
        %v445 = vmax.f32 %v444, 0.0
        %v446 = vadd.f32 %v445, 1e-05
        %v447 = vrsqrt.pop %v446
        %v448 = vmul.f32 %v447, %v446
        %v449 = vmul.f32 %v448, %v447
        %v450 = vmul.f32 0.5, %v449
        %v451 = vsub.f32 1.5, %v450
        %v452 = vmul.f32 %v447, %v451
        %vm453 = vweird.f32 %v446
        %vm454 = vweird.f32 %v447
        %vm455 = vmor %vm453, %vm454
        %v456 = vsel %vm455, %v447, %v452
        %v457 = vsub.f32 %v432, %v441
        %v458 = vmul.f32 %v457, %v456
        %v459 = vld [vmem:[#allocation8] sm:$0x1]
        %v461 = vperm.slane %v459, 0
        %v463 = vmul.f32 %v458, %v461
        %v464 = vld [vmem:[#allocation10] sm:$0x1]
        %v466 = vperm.slane %v464, 0
        %v468 = vadd.f32 %v463, %v466
        %v469 = vld [vmem:[%s397] sm:$0x1]
        %v470 = vadd.f32 %v469, 1.0
        %v472 = vperm.slane %v470, 0
        %v474 = vmul.f32 %v468, %v472
        %v475 = vld [vmem:[%s400] sm:$0x1]
        %v477 = vperm.slane %v475, 0
        %v479 = vadd.f32 %v474, %v477
        %v480 = vxor.u32 %v479, 2147483648
        %v481 = vmul.f32 %v480, 1.442695
        %v482 = vpow.pop %v481
        %v483 = vadd.f32 %v482, 1.0
        %v484 = vrcp.pop %v483
        %v485 = vmul.f32 %v483, %v484
        %v486 = vsub.f32 1.0, %v485
        %v487 = vmul.f32 %v484, %v486
        %v488 = vadd.f32 %v484, %v487
        %vm489 = vweird.f32 %v483
        %vm490 = vweird.f32 %v484
        %vm491 = vmor %vm489, %vm490
        %v492 = vsel %vm491, %v484, %v488
        %v493 = vand.u32 2147483647, %v483
        %vm494 = vcmp.eq.f32.partialorder %v493, 8.507059e+37
        %v495 = vand.u32 %v483, 2147483648
        %v496 = vor.u32 1.1754944e-38, %v495
        %v497 = vsel %vm494, %v496, %v492
        %v498 = vmul.f32 1.0, %v497
        %v499 = vmul.f32 %v479, %v498
        %500 = vst.msk [vmem:[%s394] sm:$0xff] %vm410, %v499
        %s501 = sand.u32 %s212, 1
        %s502 = scalar_lea.sflag [#allocation4], %s501
        %s503 = sand.u32 %s212, 1
        %s504 = smul.addr %s503, 8
        %s505 = scalar_lea.vmem [#allocation11], %s504
        // Predicated region
        $region69: #{tpu_custom_call.1} parent=47 // pred_check
          %p506 = pneg %p222
        $region70: #{tpu_custom_call.1} parent=47 // pred_check_branch
          %508 = sbr.rel (%p506) target = $region72
        $region71: #{tpu_custom_call.1} parent=47 // pred_region
          %510 = vsyncadd %s502, 0
          %s511 = sadd.s32 %s31, %s30
          %s512 = smul.addr %s511, 8
          %s513 = scalar_lea.hbm %s7, %s512
          %s515 = sshll.u32 %s505, 4
          %s516 = int_to_ptr.vmem [resolvable:$true] %s515
          %s517 = sshll.u32 %s513, 4
          %s518 = int_to_ptr.hbm [resolvable:$true] %s517
          %520 = dma.vmem_to_hbm [thread:$0]  %s516, 128, %s518, %s502
        $region72: #{tpu_custom_call.1} parent=47 // pred_fallthru
          _
      $region48: #{tpu_custom_call.1} parent=5 // pred_fallthru
        _
      %p521 = scmp.le.s32.totalorder 2, %s21
      // Predicated region
      $region73: #{tpu_custom_call.1} parent=5 // pred_check
        %p522 = pneg %p521
      $region74: #{tpu_custom_call.1} parent=5 // pred_check_branch
        %524 = sbr.rel (%p522) target = $region76
      $region75: #{tpu_custom_call.1} parent=5 // pred_region
        %s525 = ssub.s32 %s21, 2
        // Predicated region
        $region77: #{tpu_custom_call.1} parent=75 // pred_check
          %p526 = pneg %p228
        $region78: #{tpu_custom_call.1} parent=75 // pred_check_branch
          %528 = sbr.rel (%p526) target = $region80
        $region79: #{tpu_custom_call.1} parent=75 // pred_region
          %s529 = sand.u32 %s213, 1
          %s530 = scalar_lea.sflag [#allocation4], %s529
          %s531 = sand.u32 %s213, 1
          %s532 = smul.addr %s531, 8
          %s533 = scalar_lea.vmem [#allocation11], %s532
          %535 = dma.done %s530, 128
        $region80: #{tpu_custom_call.1} parent=75 // pred_fallthru
          _
      $region76: #{tpu_custom_call.1} parent=5 // pred_fallthru
        _
    $region6: #{tpu_custom_call.1} parent=1 // loop_footer
      %s25 = sadd.s32 1, %s21
    $region7: #{tpu_custom_call.1} parent=1 // loop_footer_branch
      %20 = sbr.rel target = $region3
    $region8: #{tpu_custom_call.1} parent=1 // loop_exit
      _
    %536 = vsyncpa [#allocation3], 1
    %s537 = scalar_lea.sflag [#allocation3], 1
    %538 = vsyncpa %s537, 1
    %539 = vsyncpa [#allocation6], 1
    %540 = vsyncpa [#allocation9], 1
    %541 = vsyncpa [#allocation4], 1
    %s542 = scalar_lea.sflag [#allocation4], 1
    %543 = vsyncpa %s542, 1

</llo_original>
